<compile_context>
chip_gen: v6e
topology: v6e:2x2x1
jax: 0.10.0
libtpu: 0.0.40
codegen_flags: <defaults>
</compile_context>

<pallas_src>
import jax
import jax.numpy as jnp
from jax import lax
from jax.experimental import pallas as pl
from jax.experimental.pallas import tpu as pltpu


def _ceil_to(x, m):
    return (x + m - 1) // m * m


# --------------------------------------------------------------------------------------
# Kernel
# --------------------------------------------------------------------------------------
def _make_block_kernel(H, W, B, Cin_p, Cmid_p, Cout):
    HW = H * W
    LANE = B * HW

    def kernel(mask_ref, x_ref, w1_ref, w2_ref, out_ref):
        # mask_ref: (8, LANE)          validity masks for the 8 non-centre taps
        #                              (implements padding=1; tiled across the B
        #                              images packed into the lane axis, so wraps
        #                              across image boundaries are zeroed too).
        # x_ref   : (1, Cin_p, LANE)   channels (zero-padded to 8-mult) in sublanes,
        #                              B images * H*W flattened in lanes.
        # w1_ref  : (Cmid_p, 9*Cin_p+1)  col = (ky*3+kx)*Cin_p + ci; last col = bias.
        # w2_ref  : (Cout,   9*Cmid_p+1)
        # out_ref : (1, Cout, LANE)    lane-dense output slab.
        masks = mask_ref[...]                               # (8, LANE) f32
        ones_row = jnp.ones((1, LANE), jnp.float32)         # bias row of the patch

        def im2col(a):
            # a: (C_p, LANE) f32 -> (9*C_p + 1, LANE) patch matrix.
            # Non-centre taps: XLU lane-rotate + mask multiply; the mask zeroes every
            # wrapped position (row edges, image top/bottom, image-to-image wrap),
            # exactly reproducing zero padding.
            parts = []
            m = 0
            for ky in range(3):
                for kx in range(3):
                    dy, dx = ky - 1, kx - 1
                    if dy == 0 and dx == 0:
                        parts.append(a)                     # centre tap: always in-bounds
                    else:
                        s = dy * W + dx
                        rolled = pltpu.roll(a, shift=(-s) % LANE, axis=1)
                        parts.append(rolled * masks[m:m + 1, :])
                        m += 1
            parts.append(ones_row)                          # folds the bias into the matmul
            # Every part is 8-sublane aligned (C_p % 8 == 0), so this is plain stacking.
            return jnp.concatenate(parts, axis=0)

        x = x_ref[0]                                        # (Cin_p, LANE) f32

        # conv1 (+bias) + ReLU: one MXU matmul (Cmid_p, K1) @ (K1, LANE).
        p1 = im2col(x).astype(w1_ref.dtype)
        h = jnp.maximum(
            jnp.dot(w1_ref[...], p1, preferred_element_type=jnp.float32), 0.0)

        # conv2 (+bias) + ReLU: padding of the intermediate handled by the same masks
        # (no padded scratch, no store/reload round trip).
        p2 = im2col(h).astype(w2_ref.dtype)
        o = jnp.maximum(
            jnp.dot(w2_ref[...], p2, preferred_element_type=jnp.float32), 0.0)

        out_ref[0] = o.astype(out_ref.dtype)
        # TODO(synk): for large channel counts, drop the materialized (9*C, LANE) patch
        # and accumulate 9 per-tap matmuls (acc += w_tap @ masked_roll(x)) instead.

    return kernel


# --------------------------------------------------------------------------------------
# Host-side helpers
# --------------------------------------------------------------------------------------
def _fold_bn(w_oihw, b, bn, eps=1e-5):
    """Fold inference-mode BatchNorm2d (gamma, beta, mean, var) into the conv."""
    gamma, beta, mean, var = bn
    scale = gamma / jnp.sqrt(var + eps)
    w = w_oihw * scale[:, None, None, None]
    b = (b - mean) * scale + beta
    return w, b


def _pack_conv(w_oihw, b, cin_p, cout_p=None):
    """(Co, Ci, 3, 3) + (Co,) -> (Co_p, 9*cin_p + 1): channel-padded, im2col column
    order (ky*3+kx)*cin_p + ci, bias as the last column (matches the ones patch row)."""
    co, ci, _, _ = w_oihw.shape
    w = jnp.transpose(w_oihw, (0, 2, 3, 1))                 # (co, 3, 3, ci)
    if cin_p > ci:
        w = jnp.pad(w, ((0, 0), (0, 0), (0, 0), (0, cin_p - ci)))
    w = w.reshape(co, 9 * cin_p)
    w = jnp.concatenate([w, b.reshape(co, 1)], axis=1)      # bias column
    if cout_p is not None and cout_p > co:
        w = jnp.pad(w, ((0, cout_p - co), (0, 0)))          # zero rows (zero bias too)
    return w


def _tap_masks(H, W, B):
    """(8, B*H*W) f32 masks for the 8 non-centre 3x3 taps: 1 iff the tap lands inside
    the image.  Kept as a (tiny, resident) kernel input rather than regenerated
    in-kernel, to avoid vector integer div/mod for non-power-of-two H/W."""
    ys, xs = jnp.meshgrid(jnp.arange(H), jnp.arange(W), indexing="ij")
    rows = []
    for ky in range(3):
        for kx in range(3):
            dy, dx = ky - 1, kx - 1
            if dy == 0 and dx == 0:
                continue
            ok = (ys + dy >= 0) & (ys + dy < H) & (xs + dx >= 0) & (xs + dx < W)
            rows.append(ok.reshape(-1))
    m = jnp.stack(rows, axis=0).astype(jnp.float32)          # (8, HW)
    return jnp.tile(m, (1, B))                               # (8, B*HW)


def _vmem_budget_bytes():
    """Per-chip VMEM capacity with ~25% headroom (v7x: 64 MiB/core, v5e/v6e: 128 MiB).
    Falls back to the smallest (v7x) figure if the query is unavailable."""
    try:
        cap = int(pltpu.get_tpu_info().vmem_capacity_bytes)
    except Exception:
        cap = 64 * 1024 * 1024
    return (cap * 3) // 4


def _per_image_vmem_bytes(HW, cin_p, cmid_p, cout):
    """Rough f32 working-set bytes per image: double-buffered in/out blocks, both
    im2col patches, intermediates, tiled masks."""
    return 4 * HW * (2 * (cin_p + cout)
                     + (9 * cin_p + 1) + (9 * cmid_p + 1)
                     + cmid_p + cout + 2 * 8)


def _pick_images_per_step(N, HW, cin_p, cmid_p, cout, vmem_budget, min_grid_steps):
    """Largest divisor B of N that keeps >= min_grid_steps grid steps (pipeline overlap,
    both v7x TensorCores busy) and whose working set fits comfortably in VMEM."""
    per_image = _per_image_vmem_bytes(HW, cin_p, cmid_p, cout)
    cap = max(1, (vmem_budget // 2) // max(per_image, 1))
    best = 1
    for b in range(1, N + 1):
        if b > cap:
            break
        if N % b:
            continue
        if N // b >= min_grid_steps:
            best = b
    return best


# --------------------------------------------------------------------------------------
# Forward wrapper
# --------------------------------------------------------------------------------------
def block_forward(x_nchw, w1_oihw, b1, w2_oihw, b2, bn1=None, bn2=None,
                  *, min_grid_steps=8, use_bf16_mxu=False):
    """Pallas forward for `Block`.

    x_nchw : (N, Cin, H, W) f32
    w1_oihw: (Cmid, Cin, 3, 3), b1: (Cmid,)
    w2_oihw: (Cout, Cmid, 3, 3), b2: (Cout,)
    bn1/bn2: optional inference-mode BatchNorm params (gamma, beta, mean, var).
    use_bf16_mxu: cast MXU operands to bf16 (channel-scaling path; loosen tolerances).
    # TODO(synk): training-mode BatchNorm (batch statistics + running-stat updates) has
    # no clean per-tile fold and is not implemented.
    returns (N, Cout, H, W) f32
    """
    N, Cin, H, W = x_nchw.shape
    Cmid = w1_oihw.shape[0]
    Cout = w2_oihw.shape[0]
    HW = H * W

    if bn1 is not None:
        w1_oihw, b1 = _fold_bn(w1_oihw, b1, bn1)
    if bn2 is not None:
        w2_oihw, b2 = _fold_bn(w2_oihw, b2, bn2)

    Cin_p = _ceil_to(Cin, 8)
    Cmid_p = _ceil_to(Cmid, 8)

    vmem_budget = _vmem_budget_bytes()
    B = _pick_images_per_step(N, HW, Cin_p, Cmid_p, Cout, vmem_budget, min_grid_steps)
    G = N // B
    LANE = B * HW
    K1 = 9 * Cin_p + 1
    K2 = 9 * Cmid_p + 1

    # --- layout plumbing (XLA-side reshapes/transposes, no kernel compute) ---
    x_flat = x_nchw.reshape(N, Cin, HW).astype(jnp.float32)
    if Cin_p > Cin:
        x_flat = jnp.pad(x_flat, ((0, 0), (0, Cin_p - Cin), (0, 0)))
    # Pack B images into the lane axis: (G, Cin_p, B*HW), lane index = b*HW + y*W + x.
    x_lane = (x_flat.reshape(G, B, Cin_p, HW)
              .transpose(0, 2, 1, 3)
              .reshape(G, Cin_p, LANE))

    mxu_dtype = jnp.bfloat16 if use_bf16_mxu else jnp.float32
    w1_aug = _pack_conv(w1_oihw.astype(jnp.float32), b1.astype(jnp.float32),
                        Cin_p, Cmid_p).astype(mxu_dtype)     # (Cmid_p, K1)
    w2_aug = _pack_conv(w2_oihw.astype(jnp.float32), b2.astype(jnp.float32),
                        Cmid_p, None).astype(mxu_dtype)      # (Cout, K2)
    masks = _tap_masks(H, W, B)                              # (8, LANE)

    # vmem limit: actual footprint with generous margin, capped by per-chip budget.
    est_step = (_per_image_vmem_bytes(HW, Cin_p, Cmid_p, Cout) * B
                + 4 * (Cmid_p * K1 + Cout * K2))
    vmem_limit = int(min(vmem_budget, max(4 * est_step, 16 * 1024 * 1024)))

    kernel = _make_block_kernel(H, W, B, Cin_p, Cmid_p, Cout)

    out_lane = pl.pallas_call(
        kernel,
        out_shape=jax.ShapeDtypeStruct((G, Cout, LANE), jnp.float32),
        grid_spec=pltpu.PrefetchScalarGridSpec(
            num_scalar_prefetch=0,
            grid=(G,),
            in_specs=[
                pl.BlockSpec((8, LANE), lambda i: (0, 0)),            # tap masks
                pl.BlockSpec((1, Cin_p, LANE), lambda i: (i, 0, 0)),  # activations
                pl.BlockSpec((Cmid_p, K1), lambda i: (0, 0)),         # conv1 w+b
                pl.BlockSpec((Cout, K2), lambda i: (0, 0)),           # conv2 w+b
            ],
            out_specs=pl.BlockSpec((1, Cout, LANE), lambda i: (i, 0, 0)),
        ),
        compiler_params=pltpu.CompilerParams(
            dimension_semantics=("parallel",),
            vmem_limit_bytes=vmem_limit,
        ),
    )(masks, x_lane, w1_aug, w2_aug)

    # Unpack the lane axis back to (N, Cout, H, W).
    return (out_lane.reshape(G, Cout, B, HW)
            .transpose(0, 2, 1, 3)
            .reshape(N, Cout, H, W))


# --------------------------------------------------------------------------------------
# Plain-JAX reference (for validation)
# --------------------------------------------------------------------------------------
def _reference_forward(x, w1, b1, w2, b2, bn1=None, bn2=None, eps=1e-5):
    dn = ("NCHW", "OIHW", "NCHW")

    def bn_apply(y, bn):
        gamma, beta, mean, var = bn
        return (gamma[None, :, None, None]
                * (y - mean[None, :, None, None])
                / jnp.sqrt(var[None, :, None, None] + eps)
                + beta[None, :, None, None])

    y = lax.conv_general_dilated(x, w1, (1, 1), "SAME", dimension_numbers=dn)
    y = y + b1[None, :, None, None]
    if bn1 is not None:
        y = bn_apply(y, bn1)
    y = jnp.maximum(y, 0.0)
    y = lax.conv_general_dilated(y, w2, (1, 1), "SAME", dimension_numbers=dn)
    y = y + b2[None, :, None, None]
    if bn2 is not None:
        y = bn_apply(y, bn2)
    return jnp.maximum(y, 0.0)


# --------------------------------------------------------------------------------------
# Demo / self-test
# --------------------------------------------------------------------------------------
if __name__ == "__main__":
    key = jax.random.PRNGKey(0)
    kx, kp, kbn, kx2 = jax.random.split(key, 4)

    N, Cin, Cmid, Cout, H, W = 2, 4, 8, 4, 16, 16

    kw1, kb1, kw2, kb2 = jax.random.split(kp, 4)
    x = jax.random.normal(kx, (N, Cin, H, W), jnp.float32)
    w1 = jax.random.normal(kw1, (Cmid, Cin, 3, 3), jnp.float32) * (1.0 / (Cin * 9) ** 0.5)
    b1 = jax.random.normal(kb1, (Cmid,), jnp.float32) * 0.1
    w2 = jax.random.normal(kw2, (Cout, Cmid, 3, 3), jnp.float32) * (1.0 / (Cmid * 9) ** 0.5)
    b2 = jax.random.normal(kb2, (Cout,), jnp.float32) * 0.1

    def check(out, ref, tag):
        assert out.shape == ref.shape, (tag, out.shape, ref.shape)
        err = float(jnp.max(jnp.abs(out - ref)))
        assert jnp.allclose(out, ref, atol=1e-4, rtol=1e-4), (tag, err)

    # 1) batch_norm=False (module default), N=2 -> B=1, grid=(2,)
    out = jax.block_until_ready(block_forward(x, w1, b1, w2, b2))
    ref = jax.block_until_ready(_reference_forward(x, w1, b1, w2, b2))
    check(out, ref, "no_bn")

    # 2) batch_norm=True (inference-mode BN folded into the convs)
    bks = jax.random.split(kbn, 8)
    bn1 = (1.0 + 0.1 * jax.random.normal(bks[0], (Cmid,)),
           0.1 * jax.random.normal(bks[1], (Cmid,)),
           0.1 * jax.random.normal(bks[2], (Cmid,)),
           0.5 + jax.random.uniform(bks[3], (Cmid,)))
    bn2 = (1.0 + 0.1 * jax.random.normal(bks[4], (Cout,)),
           0.1 * jax.random.normal(bks[5], (Cout,)),
           0.1 * jax.random.normal(bks[6], (Cout,)),
           0.5 + jax.random.uniform(bks[7], (Cout,)))
    out_bn = jax.block_until_ready(block_forward(x, w1, b1, w2, b2, bn1=bn1, bn2=bn2))
    ref_bn = jax.block_until_ready(_reference_forward(x, w1, b1, w2, b2, bn1=bn1, bn2=bn2))
    check(out_bn, ref_bn, "bn")

    # 3) larger batch: exercises packing B>1 images into the lane axis per grid step
    #    (N=16, min_grid_steps=4 -> B=4, LANE=4*256, grid=(4,)).
    N2 = 16
    x2 = jax.random.normal(kx2, (N2, Cin, H, W), jnp.float32)
    out2 = jax.block_until_ready(block_forward(x2, w1, b1, w2, b2, min_grid_steps=4))
    ref2 = jax.block_until_ready(_reference_forward(x2, w1, b1, w2, b2))
    check(out2, ref2, "batched_lanes")

    print("KERNEL_OK")
</pallas_src>

<mosaic_0001>
module attributes {stable_mosaic.version = 11 : i64} {
  func.func @kernel(%arg0: i32, %arg1: memref<8x256xf32, #tpu.memory_space<vmem>>, %arg2: memref<1x8x256xf32, #tpu.memory_space<vmem>>, %arg3: memref<8x73xf32, #tpu.memory_space<vmem>>, %arg4: memref<4x73xf32, #tpu.memory_space<vmem>>, %arg5: memref<1x4x256xf32, #tpu.memory_space<vmem>>) attributes {dimension_semantics = [#tpu.dimension_semantics<parallel>], iteration_bounds = array<i64: 2>, scalar_prefetch = 0 : i64, scratch_operands = 0 : i64, tpu.core_type = #tpu.core_type<tc>, window_params = [{pipeline_mode = #tpu.pipeline_mode<synchronous>, transform_indices = @transform_0, window_bounds = array<i64: 8, 256>}, {transform_indices = @transform_1, window_bounds = array<i64: 1, 8, 256>}, {pipeline_mode = #tpu.pipeline_mode<synchronous>, transform_indices = @transform_2, window_bounds = array<i64: 8, 73>}, {pipeline_mode = #tpu.pipeline_mode<synchronous>, transform_indices = @transform_3, window_bounds = array<i64: 4, 73>}, {transform_indices = @transform_4, window_bounds = array<i64: 1, 4, 256>}]} {
    %c0 = arith.constant 0 : index
    %c0_0 = arith.constant 0 : index
    %0 = vector.load %arg1[%c0, %c0_0] : memref<8x256xf32, #tpu.memory_space<vmem>>, vector<8x256xf32>
    %cst = arith.constant 1.000000e+00 : f32
    %1 = vector.broadcast %cst : f32 to vector<1x256xf32>
    %c0_1 = arith.constant 0 : index
    %c0_2 = arith.constant 0 : index
    %c0_3 = arith.constant 0 : index
    %2 = vector.load %arg2[%c0_1, %c0_2, %c0_3] : memref<1x8x256xf32, #tpu.memory_space<vmem>>, vector<1x8x256xf32>
    %3 = vector.shape_cast %2 : vector<1x8x256xf32> to vector<8x256xf32>
    %c17_i32 = arith.constant 17 : i32
    %4 = tpu.dynamic_rotate %3 by %c17_i32 dim 1 : vector<8x256xf32>, i32 -> vector<8x256xf32>
    %5 = vector.extract_strided_slice %0 {offsets = [0, 0], sizes = [1, 256], strides = [1, 1]} : vector<8x256xf32> to vector<1x256xf32>
    %6 = vector.broadcast %5 : vector<1x256xf32> to vector<8x256xf32>
    %7 = arith.mulf %4, %6 : vector<8x256xf32>
    %c16_i32 = arith.constant 16 : i32
    %8 = tpu.dynamic_rotate %3 by %c16_i32 dim 1 : vector<8x256xf32>, i32 -> vector<8x256xf32>
    %9 = vector.extract_strided_slice %0 {offsets = [1, 0], sizes = [1, 256], strides = [1, 1]} : vector<8x256xf32> to vector<1x256xf32>
    %10 = vector.broadcast %9 : vector<1x256xf32> to vector<8x256xf32>
    %11 = arith.mulf %8, %10 : vector<8x256xf32>
    %c15_i32 = arith.constant 15 : i32
    %12 = tpu.dynamic_rotate %3 by %c15_i32 dim 1 : vector<8x256xf32>, i32 -> vector<8x256xf32>
    %13 = vector.extract_strided_slice %0 {offsets = [2, 0], sizes = [1, 256], strides = [1, 1]} : vector<8x256xf32> to vector<1x256xf32>
    %14 = vector.broadcast %13 : vector<1x256xf32> to vector<8x256xf32>
    %15 = arith.mulf %12, %14 : vector<8x256xf32>
    %c1_i32 = arith.constant 1 : i32
    %16 = tpu.dynamic_rotate %3 by %c1_i32 dim 1 : vector<8x256xf32>, i32 -> vector<8x256xf32>
    %17 = vector.extract_strided_slice %0 {offsets = [3, 0], sizes = [1, 256], strides = [1, 1]} : vector<8x256xf32> to vector<1x256xf32>
    %18 = vector.broadcast %17 : vector<1x256xf32> to vector<8x256xf32>
    %19 = arith.mulf %16, %18 : vector<8x256xf32>
    %c255_i32 = arith.constant 255 : i32
    %20 = tpu.dynamic_rotate %3 by %c255_i32 dim 1 : vector<8x256xf32>, i32 -> vector<8x256xf32>
    %21 = vector.extract_strided_slice %0 {offsets = [4, 0], sizes = [1, 256], strides = [1, 1]} : vector<8x256xf32> to vector<1x256xf32>
    %22 = vector.broadcast %21 : vector<1x256xf32> to vector<8x256xf32>
    %23 = arith.mulf %20, %22 : vector<8x256xf32>
    %c241_i32 = arith.constant 241 : i32
    %24 = tpu.dynamic_rotate %3 by %c241_i32 dim 1 : vector<8x256xf32>, i32 -> vector<8x256xf32>
    %25 = vector.extract_strided_slice %0 {offsets = [5, 0], sizes = [1, 256], strides = [1, 1]} : vector<8x256xf32> to vector<1x256xf32>
    %26 = vector.broadcast %25 : vector<1x256xf32> to vector<8x256xf32>
    %27 = arith.mulf %24, %26 : vector<8x256xf32>
    %c240_i32 = arith.constant 240 : i32
    %28 = tpu.dynamic_rotate %3 by %c240_i32 dim 1 : vector<8x256xf32>, i32 -> vector<8x256xf32>
    %29 = vector.extract_strided_slice %0 {offsets = [6, 0], sizes = [1, 256], strides = [1, 1]} : vector<8x256xf32> to vector<1x256xf32>
    %30 = vector.broadcast %29 : vector<1x256xf32> to vector<8x256xf32>
    %31 = arith.mulf %28, %30 : vector<8x256xf32>
    %c239_i32 = arith.constant 239 : i32
    %32 = tpu.dynamic_rotate %3 by %c239_i32 dim 1 : vector<8x256xf32>, i32 -> vector<8x256xf32>
    %33 = vector.extract_strided_slice %0 {offsets = [7, 0], sizes = [1, 256], strides = [1, 1]} : vector<8x256xf32> to vector<1x256xf32>
    %34 = vector.broadcast %33 : vector<1x256xf32> to vector<8x256xf32>
    %35 = arith.mulf %32, %34 : vector<8x256xf32>
    %36 = tpu.concatenate %7, %11, %15, %19, %3, %23, %27, %31, %35, %1 in 0 : vector<8x256xf32>, vector<8x256xf32>, vector<8x256xf32>, vector<8x256xf32>, vector<8x256xf32>, vector<8x256xf32>, vector<8x256xf32>, vector<8x256xf32>, vector<8x256xf32>, vector<1x256xf32> -> vector<73x256xf32>
    %c0_4 = arith.constant 0 : index
    %c0_5 = arith.constant 0 : index
    %37 = vector.load %arg3[%c0_4, %c0_5] : memref<8x73xf32, #tpu.memory_space<vmem>>, vector<8x73xf32>
    %cst_6 = arith.constant dense<0.000000e+00> : vector<8x256xf32>
    %38 = tpu.matmul %37, %36, %cst_6 {dimension_numbers = #tpu.dot_dimension_numbers<[1], [0], [0], [1], [0, 0, 1, 1], [], []>} : vector<8x73xf32>, vector<73x256xf32>, vector<8x256xf32> -> vector<8x256xf32>
    %cst_7 = arith.constant 0.000000e+00 : f32
    %39 = vector.broadcast %cst_7 : f32 to vector<8x256xf32>
    %40 = arith.maximumf %38, %39 : vector<8x256xf32>
    %c17_i32_8 = arith.constant 17 : i32
    %41 = tpu.dynamic_rotate %40 by %c17_i32_8 dim 1 : vector<8x256xf32>, i32 -> vector<8x256xf32>
    %42 = vector.extract_strided_slice %0 {offsets = [0, 0], sizes = [1, 256], strides = [1, 1]} : vector<8x256xf32> to vector<1x256xf32>
    %43 = vector.broadcast %42 : vector<1x256xf32> to vector<8x256xf32>
    %44 = arith.mulf %41, %43 : vector<8x256xf32>
    %c16_i32_9 = arith.constant 16 : i32
    %45 = tpu.dynamic_rotate %40 by %c16_i32_9 dim 1 : vector<8x256xf32>, i32 -> vector<8x256xf32>
    %46 = vector.extract_strided_slice %0 {offsets = [1, 0], sizes = [1, 256], strides = [1, 1]} : vector<8x256xf32> to vector<1x256xf32>
    %47 = vector.broadcast %46 : vector<1x256xf32> to vector<8x256xf32>
    %48 = arith.mulf %45, %47 : vector<8x256xf32>
    %c15_i32_10 = arith.constant 15 : i32
    %49 = tpu.dynamic_rotate %40 by %c15_i32_10 dim 1 : vector<8x256xf32>, i32 -> vector<8x256xf32>
    %50 = vector.extract_strided_slice %0 {offsets = [2, 0], sizes = [1, 256], strides = [1, 1]} : vector<8x256xf32> to vector<1x256xf32>
    %51 = vector.broadcast %50 : vector<1x256xf32> to vector<8x256xf32>
    %52 = arith.mulf %49, %51 : vector<8x256xf32>
    %c1_i32_11 = arith.constant 1 : i32
    %53 = tpu.dynamic_rotate %40 by %c1_i32_11 dim 1 : vector<8x256xf32>, i32 -> vector<8x256xf32>
    %54 = vector.extract_strided_slice %0 {offsets = [3, 0], sizes = [1, 256], strides = [1, 1]} : vector<8x256xf32> to vector<1x256xf32>
    %55 = vector.broadcast %54 : vector<1x256xf32> to vector<8x256xf32>
    %56 = arith.mulf %53, %55 : vector<8x256xf32>
    %c255_i32_12 = arith.constant 255 : i32
    %57 = tpu.dynamic_rotate %40 by %c255_i32_12 dim 1 : vector<8x256xf32>, i32 -> vector<8x256xf32>
    %58 = vector.extract_strided_slice %0 {offsets = [4, 0], sizes = [1, 256], strides = [1, 1]} : vector<8x256xf32> to vector<1x256xf32>
    %59 = vector.broadcast %58 : vector<1x256xf32> to vector<8x256xf32>
    %60 = arith.mulf %57, %59 : vector<8x256xf32>
    %c241_i32_13 = arith.constant 241 : i32
    %61 = tpu.dynamic_rotate %40 by %c241_i32_13 dim 1 : vector<8x256xf32>, i32 -> vector<8x256xf32>
    %62 = vector.extract_strided_slice %0 {offsets = [5, 0], sizes = [1, 256], strides = [1, 1]} : vector<8x256xf32> to vector<1x256xf32>
    %63 = vector.broadcast %62 : vector<1x256xf32> to vector<8x256xf32>
    %64 = arith.mulf %61, %63 : vector<8x256xf32>
    %c240_i32_14 = arith.constant 240 : i32
    %65 = tpu.dynamic_rotate %40 by %c240_i32_14 dim 1 : vector<8x256xf32>, i32 -> vector<8x256xf32>
    %66 = vector.extract_strided_slice %0 {offsets = [6, 0], sizes = [1, 256], strides = [1, 1]} : vector<8x256xf32> to vector<1x256xf32>
    %67 = vector.broadcast %66 : vector<1x256xf32> to vector<8x256xf32>
    %68 = arith.mulf %65, %67 : vector<8x256xf32>
    %c239_i32_15 = arith.constant 239 : i32
    %69 = tpu.dynamic_rotate %40 by %c239_i32_15 dim 1 : vector<8x256xf32>, i32 -> vector<8x256xf32>
    %70 = vector.extract_strided_slice %0 {offsets = [7, 0], sizes = [1, 256], strides = [1, 1]} : vector<8x256xf32> to vector<1x256xf32>
    %71 = vector.broadcast %70 : vector<1x256xf32> to vector<8x256xf32>
    %72 = arith.mulf %69, %71 : vector<8x256xf32>
    %73 = tpu.concatenate %44, %48, %52, %56, %40, %60, %64, %68, %72, %1 in 0 : vector<8x256xf32>, vector<8x256xf32>, vector<8x256xf32>, vector<8x256xf32>, vector<8x256xf32>, vector<8x256xf32>, vector<8x256xf32>, vector<8x256xf32>, vector<8x256xf32>, vector<1x256xf32> -> vector<73x256xf32>
    %c0_16 = arith.constant 0 : index
    %c0_17 = arith.constant 0 : index
    %74 = vector.load %arg4[%c0_16, %c0_17] : memref<4x73xf32, #tpu.memory_space<vmem>>, vector<4x73xf32>
    %cst_18 = arith.constant dense<0.000000e+00> : vector<4x256xf32>
    %75 = tpu.matmul %74, %73, %cst_18 {dimension_numbers = #tpu.dot_dimension_numbers<[1], [0], [0], [1], [0, 0, 1, 1], [], []>} : vector<4x73xf32>, vector<73x256xf32>, vector<4x256xf32> -> vector<4x256xf32>
    %cst_19 = arith.constant 0.000000e+00 : f32
    %76 = vector.broadcast %cst_19 : f32 to vector<4x256xf32>
    %77 = arith.maximumf %75, %76 : vector<4x256xf32>
    %c0_20 = arith.constant 0 : index
    %c0_21 = arith.constant 0 : index
    %c0_22 = arith.constant 0 : index
    %78 = vector.load %arg5[%c0_20, %c0_21, %c0_22] : memref<1x4x256xf32, #tpu.memory_space<vmem>>, vector<1x4x256xf32>
    %79 = vector.shape_cast %78 : vector<1x4x256xf32> to vector<4x256xf32>
    %80 = vector.shape_cast %77 : vector<4x256xf32> to vector<1x4x256xf32>
    tpu.vector_store %arg5[%c0_20, %c0_21, %c0_22], %80 {strides = array<i32>} : memref<1x4x256xf32, #tpu.memory_space<vmem>>, vector<1x4x256xf32>,
    return
  }
  func.func @transform_0(%arg0: i32) -> (i32, i32) {
    %c0_i32 = arith.constant 0 : i32
    %c0_i32_0 = arith.constant 0 : i32
    %c0_i32_1 = arith.constant 0 : i32
    return %c0_i32, %c0_i32_0 : i32, i32
  }
  func.func @transform_1(%arg0: i32) -> (i32, i32, i32) {
    %c0_i32 = arith.constant 0 : i32
    %c0_i32_0 = arith.constant 0 : i32
    %c0_i32_1 = arith.constant 0 : i32
    return %arg0, %c0_i32, %c0_i32_0 : i32, i32, i32
  }
  func.func @transform_2(%arg0: i32) -> (i32, i32) {
    %c0_i32 = arith.constant 0 : i32
    %c0_i32_0 = arith.constant 0 : i32
    %c0_i32_1 = arith.constant 0 : i32
    return %c0_i32, %c0_i32_0 : i32, i32
  }
  func.func @transform_3(%arg0: i32) -> (i32, i32) {
    %c0_i32 = arith.constant 0 : i32
    %c0_i32_0 = arith.constant 0 : i32
    %c0_i32_1 = arith.constant 0 : i32
    return %c0_i32, %c0_i32_0 : i32, i32
  }
  func.func @transform_4(%arg0: i32) -> (i32, i32, i32) {
    %c0_i32 = arith.constant 0 : i32
    %c0_i32_0 = arith.constant 0 : i32
    %c0_i32_1 = arith.constant 0 : i32
    return %arg0, %c0_i32, %c0_i32_0 : i32, i32, i32
  }
}

</mosaic_0001>

<llo_original>
// kernel: tpu_custom_call.1
$region0: #{tpu_custom_call.1}
  #allocation0 [shape = 'u32[]', space=smem, size = 0x4, offset = 0x4, fixed_abs, tag = 'smem constant byte address 0x4 - core index']
  #allocation1 [shape = 'u32[144,128]{1,0:T(1,128)}', space=vmem, size = 0x12000, scoped, tag = 'internal scratch']
  %s0 = inlined_call_operand.hbm [shape: f32[8,256], index: 0, kind: input, shape index: {}]
  %s1 = inlined_call_operand.hbm [shape: f32[2,8,256], index: 1, kind: input, shape index: {}]
  %s2 = inlined_call_operand.hbm [shape: f32[8,73], index: 2, kind: input, shape index: {}]
  %s3 = inlined_call_operand.vmem [shape: f32[4,73], index: 3, kind: input, shape index: {}]
  %s4 = inlined_call_operand.hbm [shape: f32[2,4,256], index: 4, kind: output, shape index: {}]
  %s5 = sld [smem:[#allocation0]]
  $region61: #{tpu_custom_call.1} parent=0
    _
  %s7 = ssub.s32 1, %s5
  %s8 = scalar_select 0, %s7, %s5
  $region1: #{tpu_custom_call.1} parent=0
    #allocation2 [shape = 'u8[8192]{0}', space=vmem, size = 0x2000, scoped, tag = 'input window, operand 0, single buffered']
    #allocation3 [shape = 's32[2]{0}', space=sflag, size = 0x8, scoped, tag = 'scoped memory for tpu_custom_call.1']
    #allocation4 [shape = 's32[2]{0}', space=sflag, size = 0x8, scoped, tag = 'scoped memory for tpu_custom_call.1']
    #allocation5 [shape = 'u8[16384]{0}', space=vmem, size = 0x4000, scoped, tag = 'input window, operand 1']
    #allocation6 [shape = 's32[2]{0}', space=sflag, size = 0x8, scoped, tag = 'scoped memory for tpu_custom_call.1']
    #allocation7 [shape = 'u8[4096]{0}', space=vmem, size = 0x1000, scoped, tag = 'input window, operand 2, single buffered']
    #allocation8 [shape = 'u8[8192]{0}', space=vmem, size = 0x2000, scoped, tag = 'output window, operand 0']
    %9 = vsyncpa [#allocation3], 0
    %10 = vsyncpa [#allocation6], 0
    %s11 = scalar_lea.sflag [#allocation6], 1
    %12 = vsyncpa %s11, 0
    %13 = vsyncpa [#allocation4], 0
    %s14 = scalar_lea.sflag [#allocation4], 1
    %15 = vsyncpa %s14, 0
    loop: start=0, step=1, limit=4
    $region2: #{tpu_custom_call.1} parent=1 // loop_pre_header
      _
    $region3: #{tpu_custom_call.1} parent=1 // loop_header
      %s17 = sphi 0, %s21
      %p18 = scmp.ge.s32.totalorder %s17, 4
      %s25 = sphi 0, %s25
      %s27 = sphi 0, %s25
      %s28 = sphi 0, %s27
      %s42 = sphi 0, %s28
      %s48 = sphi 0, %s50
      %s51 = sphi 0, %s48
      %s52 = sphi 0, %s51
      %s68 = sphi 0, %s52
      %s72 = sphi 0, %s72
      %s74 = sphi 0, %s72
      %s75 = sphi 0, %s74
      %s89 = sphi 0, %s75
      %s93 = sphi 0, %s93
      %s95 = sphi 0, %s93
      %s96 = sphi 0, %s95
      %s110 = sphi 0, %s96
      %s116 = sphi 0, %s118
      %s119 = sphi 0, %s116
      %s120 = sphi 0, %s119
      %s136 = sphi 0, %s120
    $region4: #{tpu_custom_call.1} parent=1 // loop_header_branch
      %20 = sbr.rel (%p18) target = $region8
    $region5: #{tpu_custom_call.1} parent=1 // loop_body
      %s22 = ssub.s32 %s17, 1
      %s23 = ssub.s32 %s17, 2
      %s24 = sadd.s32 %s17, 1
      %s26 = sadd.s32 %s25, 1
      %p29 = scmp.eq.s32.totalorder %s17, 1
      %p30 = scmp.ne.s32.totalorder %s25, %s27
      %p31 = scmp.eq.s32.totalorder %s17, 0
      %p32 = por %p30, %p31
      %p33 = scmp.ne.s32.totalorder %s25, %s27
      %p34 = scmp.eq.s32.totalorder %s22, 1
      %p35 = por %p33, %p34
      %p36 = scmp.ne.s32.totalorder %s27, %s28
      %p37 = scmp.eq.s32.totalorder %s22, 0
      %p38 = por %p36, %p37
      %p39 = scmp.ne.s32.totalorder %s27, %s28
      %p40 = scmp.eq.s32.totalorder %s23, 1
      %p41 = por %p39, %p40
      %p43 = scmp.ne.s32.totalorder %s28, %s42
      %p44 = scmp.eq.s32.totalorder %s23, 0
      %p45 = por %p43, %p44
      %s46 = ssub.s32 %s17, %s24
      %p47 = scmp.eq.s32.totalorder %s46, 0
      %s49 = sadd.s32 %s48, 1
      %s50 = scalar_select %p47, %s48, %s49
      %p53 = pneg %p47
      %p54 = scmp.eq.s32.totalorder %s17, 1
      %p55 = por %p53, %p54
      %p56 = scmp.ne.s32.totalorder %s48, %s51
      %p57 = scmp.eq.s32.totalorder %s17, 0
      %p58 = por %p56, %p57
      %p59 = scmp.ne.s32.totalorder %s48, %s51
      %p60 = scmp.eq.s32.totalorder %s22, 1
      %p61 = por %p59, %p60
      %p62 = scmp.ne.s32.totalorder %s51, %s52
      %p63 = scmp.eq.s32.totalorder %s22, 0
      %p64 = por %p62, %p63
      %p65 = scmp.ne.s32.totalorder %s51, %s52
      %p66 = scmp.eq.s32.totalorder %s23, 1
      %p67 = por %p65, %p66
      %p69 = scmp.ne.s32.totalorder %s52, %s68
      %p70 = scmp.eq.s32.totalorder %s23, 0
      %p71 = por %p69, %p70
      %s73 = sadd.s32 %s72, 1
      %p76 = scmp.eq.s32.totalorder %s17, 1
      %p77 = scmp.ne.s32.totalorder %s72, %s74
      %p78 = scmp.eq.s32.totalorder %s17, 0
      %p79 = por %p77, %p78
      %p80 = scmp.ne.s32.totalorder %s72, %s74
      %p81 = scmp.eq.s32.totalorder %s22, 1
      %p82 = por %p80, %p81
      %p83 = scmp.ne.s32.totalorder %s74, %s75
      %p84 = scmp.eq.s32.totalorder %s22, 0
      %p85 = por %p83, %p84
      %p86 = scmp.ne.s32.totalorder %s74, %s75
      %p87 = scmp.eq.s32.totalorder %s23, 1
      %p88 = por %p86, %p87
      %p90 = scmp.ne.s32.totalorder %s75, %s89
      %p91 = scmp.eq.s32.totalorder %s23, 0
      %p92 = por %p90, %p91
      %s94 = sadd.s32 %s93, 1
      %p97 = scmp.eq.s32.totalorder %s17, 1
      %p98 = scmp.ne.s32.totalorder %s93, %s95
      %p99 = scmp.eq.s32.totalorder %s17, 0
      %p100 = por %p98, %p99
      %p101 = scmp.ne.s32.totalorder %s93, %s95
      %p102 = scmp.eq.s32.totalorder %s22, 1
      %p103 = por %p101, %p102
      %p104 = scmp.ne.s32.totalorder %s95, %s96
      %p105 = scmp.eq.s32.totalorder %s22, 0
      %p106 = por %p104, %p105
      %p107 = scmp.ne.s32.totalorder %s95, %s96
      %p108 = scmp.eq.s32.totalorder %s23, 1
      %p109 = por %p107, %p108
      %p111 = scmp.ne.s32.totalorder %s96, %s110
      %p112 = scmp.eq.s32.totalorder %s23, 0
      %p113 = por %p111, %p112
      %s114 = ssub.s32 %s17, %s24
      %p115 = scmp.eq.s32.totalorder %s114, 0
      %s117 = sadd.s32 %s116, 1
      %s118 = scalar_select %p115, %s116, %s117
      %p121 = pneg %p115
      %p122 = scmp.eq.s32.totalorder %s17, 1
      %p123 = por %p121, %p122
      %p124 = scmp.ne.s32.totalorder %s116, %s119
      %p125 = scmp.eq.s32.totalorder %s17, 0
      %p126 = por %p124, %p125
      %p127 = scmp.ne.s32.totalorder %s116, %s119
      %p128 = scmp.eq.s32.totalorder %s22, 1
      %p129 = por %p127, %p128
      %p130 = scmp.ne.s32.totalorder %s119, %s120
      %p131 = scmp.eq.s32.totalorder %s22, 0
      %p132 = por %p130, %p131
      %p133 = scmp.ne.s32.totalorder %s119, %s120
      %p134 = scmp.eq.s32.totalorder %s23, 1
      %p135 = por %p133, %p134
      %p137 = scmp.ne.s32.totalorder %s120, %s136
      %p138 = scmp.eq.s32.totalorder %s23, 0
      %p139 = por %p137, %p138
      %p140 = scmp.le.s32.totalorder 1, %s17
      %p141 = scmp.lt.s32.totalorder %s17, 3
      %p142 = pnand %p140, %p141
      %p143 = pneg %p142
      // Predicated region
      $region9: #{tpu_custom_call.1} parent=5 // pred_check
        _
      $region10: #{tpu_custom_call.1} parent=5 // pred_check_branch
        %145 = sbr.rel (%p142) target = $region12
      $region11: #{tpu_custom_call.1} parent=5 // pred_region
        %s146 = ssub.s32 %s17, 1
        // Predicated region
        $region13: #{tpu_custom_call.1} parent=11 // pred_check
          %p147 = pneg %p38
        $region14: #{tpu_custom_call.1} parent=11 // pred_check_branch
          %149 = sbr.rel (%p147) target = $region16
        $region15: #{tpu_custom_call.1} parent=11 // pred_region
          %s151 = ssub.s32 256, 256
          %152 = vsyncadd [#allocation3], %s151
          %s154 = sshll.u32 [#allocation2], 4
          %s155 = int_to_ptr.vmem [resolvable:$true] %s154
          %157 = dma.hbm_to_vmem [thread:$0]  %s0, 256, %s155, [#allocation3]
        $region16: #{tpu_custom_call.1} parent=11 // pred_fallthru
          _
        // Predicated region
        $region17: #{tpu_custom_call.1} parent=11 // pred_check
          %p158 = pneg %p85
        $region18: #{tpu_custom_call.1} parent=11 // pred_check_branch
          %160 = sbr.rel (%p158) target = $region20
        $region19: #{tpu_custom_call.1} parent=11 // pred_region
          %s162 = ssub.s32 128, 128
          %163 = vsyncadd [#allocation6], %s162
          %s165 = sshll.u32 [#allocation7], 4
          %s166 = int_to_ptr.vmem [resolvable:$true] %s165
          %168 = dma.hbm_to_vmem [thread:$0]  %s2, 128, %s166, [#allocation6]
        $region20: #{tpu_custom_call.1} parent=11 // pred_fallthru
          _
        // Predicated region
        $region21: #{tpu_custom_call.1} parent=11 // pred_check
          %p169 = pneg %p106
        $region22: #{tpu_custom_call.1} parent=11 // pred_check_branch
          %171 = sbr.rel (%p169) target = $region24
        $region23: #{tpu_custom_call.1} parent=11 // pred_region
          _
        $region24: #{tpu_custom_call.1} parent=11 // pred_fallthru
          _
      $region12: #{tpu_custom_call.1} parent=5 // pred_fallthru
        _
      %p172 = scmp.lt.s32.totalorder %s17, 2
      // Predicated region
      $region25: #{tpu_custom_call.1} parent=5 // pred_check
        %p173 = pneg %p172
      $region26: #{tpu_custom_call.1} parent=5 // pred_check_branch
        %175 = sbr.rel (%p173) target = $region28
      $region27: #{tpu_custom_call.1} parent=5 // pred_region
        // Predicated region
        $region29: #{tpu_custom_call.1} parent=27 // pred_check
          %p176 = pneg %p58
        $region30: #{tpu_custom_call.1} parent=27 // pred_check_branch
          %178 = sbr.rel (%p176) target = $region32
        $region31: #{tpu_custom_call.1} parent=27 // pred_region
          %s179 = sand.u32 %s17, 1
          %s180 = scalar_lea.sflag [#allocation6], %s179
          %s181 = sand.u32 %s48, 1
          %s182 = smul.addr %s181, 16
          %s183 = scalar_lea.vmem [#allocation5], %s182
          %s185 = ssub.s32 256, 256
          %186 = vsyncadd %s180, %s185
          %s187 = smul.addr %s17, 2
          %s188 = smul.addr %s187, 128
          %s189 = scalar_lea.hbm %s1, %s188
          %s191 = sshll.u32 %s183, 4
          %s192 = int_to_ptr.vmem [resolvable:$true] %s191
          %194 = dma.hbm_to_vmem [thread:$0]  %s189, 256, %s192, %s180
        $region32: #{tpu_custom_call.1} parent=27 // pred_fallthru
          _
      $region28: #{tpu_custom_call.1} parent=5 // pred_fallthru
        _
      %p195 = scmp.le.s32.totalorder 1, %s17
      %p196 = scmp.lt.s32.totalorder %s17, 3
      %p197 = pnand %p195, %p196
      %p198 = pneg %p197
      // Predicated region
      $region33: #{tpu_custom_call.1} parent=5 // pred_check
        _
      $region34: #{tpu_custom_call.1} parent=5 // pred_check_branch
        %200 = sbr.rel (%p197) target = $region36
      $region35: #{tpu_custom_call.1} parent=5 // pred_region
        %s201 = ssub.s32 %s17, 1
        // Predicated region
        $region37: #{tpu_custom_call.1} parent=35 // pred_check
          %p202 = pneg %p38
        $region38: #{tpu_custom_call.1} parent=35 // pred_check_branch
          %204 = sbr.rel (%p202) target = $region40
        $region39: #{tpu_custom_call.1} parent=35 // pred_region
          %205 = dma.done [#allocation3], 256
        $region40: #{tpu_custom_call.1} parent=35 // pred_fallthru
          _
        %s206 = sand.u32 %s22, 1
        %s207 = scalar_lea.sflag [#allocation6], %s206
        %s208 = sand.u32 %s51, 1
        %s209 = smul.addr %s208, 16
        %s210 = scalar_lea.vmem [#allocation5], %s209
        // Predicated region
        $region41: #{tpu_custom_call.1} parent=35 // pred_check
          %p211 = pneg %p64
        $region42: #{tpu_custom_call.1} parent=35 // pred_check_branch
          %213 = sbr.rel (%p211) target = $region44
        $region43: #{tpu_custom_call.1} parent=35 // pred_region
          %214 = dma.done %s207, 256
        $region44: #{tpu_custom_call.1} parent=35 // pred_fallthru
          _
        // Predicated region
        $region45: #{tpu_custom_call.1} parent=35 // pred_check
          %p215 = pneg %p85
        $region46: #{tpu_custom_call.1} parent=35 // pred_check_branch
          %217 = sbr.rel (%p215) target = $region48
        $region47: #{tpu_custom_call.1} parent=35 // pred_region
          %218 = dma.done [#allocation6], 128
        $region48: #{tpu_custom_call.1} parent=35 // pred_fallthru
          _
        %p219 = pneg %p38
        %p220 = pneg %p35
        %s221 = sand.u32 %s22, 1
        %s222 = scalar_lea.sflag [#allocation6], %s221
        %s223 = sand.u32 %s51, 1
        %s224 = smul.addr %s223, 16
        %s225 = scalar_lea.vmem [#allocation5], %s224
        %p226 = pneg %p64
        %p227 = pneg %p61
        %p228 = pneg %p85
        %p229 = pneg %p82
        %p230 = pneg %p106
        %p231 = pneg %p103
        %p232 = pneg %p132
        %p233 = pneg %p129
        %s234 = sand.u32 %s119, 1
        %s235 = scalar_lea.sflag [#allocation4], %s234
        %s236 = sand.u32 %s119, 1
        %s237 = smul.addr %s236, 8
        %s238 = scalar_lea.vmem [#allocation8], %s237
        %v239 = vld [vmem:[#allocation2] sm:$0xff]
        %v240 = vld [vmem:[#allocation2 + $0x8] sm:$0xff]
        %v241 = vld [vmem:[%s210] sm:$0xff]
        %v242 = vld [vmem:[%s210 + $0x8] sm:$0xff]
        %243 = vrot.lane.b32.xlu0 %v241, 17
        %v244 = vpop.permute.xlu0 %243
        %245 = vrot.lane.b32.xlu0 %v242, 17
        %v246 = vpop.permute.xlu0 %245
        %v247 = vlaneseq
        %v248 = vand.u32 %v247, 127
        %vm249 = vcmp.lt.s32.totalorder %v248, 17
        %v250 = vsel %vm249, %v244, %v246
        %v251 = vsel %vm249, %v246, %v244
        %v252 = vlaneseq
        %v253 = vshrl.u32 %v252, 7
        %v254 = vsub.s32 0, %v253
        %v255 = vrot.slane %v239, %v254
        %v256 = vlaneseq
        %v257 = vshrl.u32 %v256, 7
        %v258 = vsub.s32 0, %v257
        %v259 = vrot.slane %v240, %v258
        %v260 = vmul.f32 %v251, %v255
        %v261 = vmul.f32 %v250, %v259
        %262 = vrot.lane.b32.xlu0 %v241, 16
        %v263 = vpop.permute.xlu0 %262
        %264 = vrot.lane.b32.xlu0 %v242, 16
        %v265 = vpop.permute.xlu0 %264
        %vm266 = vcmp.lt.s32.totalorder %v248, 16
        %v267 = vsel %vm266, %v263, %v265
        %v268 = vsel %vm266, %v265, %v263
        %v269 = vlaneseq
        %v270 = vshrl.u32 %v269, 7
        %v271 = vsub.s32 1, %v270
        %v272 = vrot.slane %v239, %v271
        %v273 = vlaneseq
        %v274 = vshrl.u32 %v273, 7
        %v275 = vsub.s32 1, %v274
        %v276 = vrot.slane %v240, %v275
        %v277 = vmul.f32 %v268, %v272
        %v278 = vmul.f32 %v267, %v276
        %279 = vrot.lane.b32.xlu0 %v241, 15
        %v280 = vpop.permute.xlu0 %279
        %281 = vrot.lane.b32.xlu0 %v242, 15
        %v282 = vpop.permute.xlu0 %281
        %vm283 = vcmp.lt.s32.totalorder %v248, 15
        %v284 = vsel %vm283, %v280, %v282
        %v285 = vsel %vm283, %v282, %v280
        %v286 = vlaneseq
        %v287 = vshrl.u32 %v286, 7
        %v288 = vsub.s32 2, %v287
        %v289 = vrot.slane %v239, %v288
        %v290 = vlaneseq
        %v291 = vshrl.u32 %v290, 7
        %v292 = vsub.s32 2, %v291
        %v293 = vrot.slane %v240, %v292
        %v294 = vmul.f32 %v285, %v289
        %v295 = vmul.f32 %v284, %v293
        %296 = vrot.lane.b32.xlu0 %v241, 1
        %v297 = vpop.permute.xlu0 %296
        %298 = vrot.lane.b32.xlu0 %v242, 1
        %v299 = vpop.permute.xlu0 %298
        %vm300 = vcmp.lt.s32.totalorder %v248, 1
        %v301 = vsel %vm300, %v297, %v299
        %v302 = vsel %vm300, %v299, %v297
        %v303 = vlaneseq
        %v304 = vshrl.u32 %v303, 7
        %v305 = vsub.s32 3, %v304
        %v306 = vrot.slane %v239, %v305
        %v307 = vlaneseq
        %v308 = vshrl.u32 %v307, 7
        %v309 = vsub.s32 3, %v308
        %v310 = vrot.slane %v240, %v309
        %v311 = vmul.f32 %v302, %v306
        %v312 = vmul.f32 %v301, %v310
        %313 = vrot.lane.b32.xlu0 %v241, 127
        %v314 = vpop.permute.xlu0 %313
        %315 = vrot.lane.b32.xlu0 %v242, 127
        %v316 = vpop.permute.xlu0 %315
        %vm317 = vcmp.lt.s32.totalorder %v248, 127
        %v318 = vsel %vm317, %v314, %v316
        %v319 = vsel %vm317, %v316, %v314
        %v320 = vlaneseq
        %v321 = vshrl.u32 %v320, 7
        %v322 = vsub.s32 4, %v321
        %v323 = vrot.slane %v239, %v322
        %v324 = vlaneseq
        %v325 = vshrl.u32 %v324, 7
        %v326 = vsub.s32 4, %v325
        %v327 = vrot.slane %v240, %v326
        %v328 = vmul.f32 %v318, %v323
        %v329 = vmul.f32 %v319, %v327
        %330 = vrot.lane.b32.xlu0 %v241, 113
        %v331 = vpop.permute.xlu0 %330
        %332 = vrot.lane.b32.xlu0 %v242, 113
        %v333 = vpop.permute.xlu0 %332
        %vm334 = vcmp.lt.s32.totalorder %v248, 113
        %v335 = vsel %vm334, %v331, %v333
        %v336 = vsel %vm334, %v333, %v331
        %v337 = vlaneseq
        %v338 = vshrl.u32 %v337, 7
        %v339 = vsub.s32 5, %v338
        %v340 = vrot.slane %v239, %v339
        %v341 = vlaneseq
        %v342 = vshrl.u32 %v341, 7
        %v343 = vsub.s32 5, %v342
        %v344 = vrot.slane %v240, %v343
        %v345 = vmul.f32 %v335, %v340
        %v346 = vmul.f32 %v336, %v344
        %347 = vrot.lane.b32.xlu0 %v241, 112
        %v348 = vpop.permute.xlu0 %347
        %349 = vrot.lane.b32.xlu0 %v242, 112
        %v350 = vpop.permute.xlu0 %349
        %vm351 = vcmp.lt.s32.totalorder %v248, 112
        %v352 = vsel %vm351, %v348, %v350
        %v353 = vsel %vm351, %v350, %v348
        %v354 = vlaneseq
        %v355 = vshrl.u32 %v354, 7
        %v356 = vsub.s32 6, %v355
        %v357 = vrot.slane %v239, %v356
        %v358 = vlaneseq
        %v359 = vshrl.u32 %v358, 7
        %v360 = vsub.s32 6, %v359
        %v361 = vrot.slane %v240, %v360
        %v362 = vmul.f32 %v352, %v357
        %v363 = vmul.f32 %v353, %v361
        %364 = vrot.lane.b32.xlu0 %v241, 111
        %v365 = vpop.permute.xlu0 %364
        %366 = vrot.lane.b32.xlu0 %v242, 111
        %v367 = vpop.permute.xlu0 %366
        %vm368 = vcmp.lt.s32.totalorder %v248, 111
        %v369 = vsel %vm368, %v365, %v367
        %v370 = vsel %vm368, %v367, %v365
        %v371 = vlaneseq
        %v372 = vshrl.u32 %v371, 7
        %v373 = vsub.s32 7, %v372
        %v374 = vrot.slane %v239, %v373
        %v375 = vlaneseq
        %v376 = vshrl.u32 %v375, 7
        %v377 = vsub.s32 7, %v376
        %v378 = vrot.slane %v240, %v377
        %v379 = vmul.f32 %v369, %v374
        %v380 = vmul.f32 %v370, %v378
        %v381 = vld [vmem:[#allocation7] sm:$0xff]
        %vm382 = vcmask 596992
        %v384 = vsel %vm382, %v381, 0
        %vm386 = vcmask 1040384
        %v388 = vsel %vm386, 1.0, 0
        %390 = vmatprep.subr.mxu0 0.0
        %391 = vmatpush1.msra.mxu0 0.0
        %392 = vmatprep.subr.mxu0 0.0
        %393 = vmatpush1.msra.mxu0 0.0
        %394 = vmatprep.subr.mxu0 0.0
        %395 = vmatpush1.msra.mxu0 0.0
        %396 = vmatprep.subr.mxu0 0.0
        %397 = vmatpush1.msra.mxu0 0.0
        %398 = vmatprep.subr.mxu0 0.0
        %399 = vmatpush1.msra.mxu0 0.0
        %400 = vmatprep.subr.mxu0 0.0
        %401 = vmatpush1.msra.mxu0 0.0
        %402 = vmatprep.subr.mxu0 %v388
        %403 = vmatpush1.msra.mxu0 %v388
        %404 = vmatprep.subr.mxu0 %v380
        %405 = vmatpush1.msra.mxu0 %v379
        %406 = vmatprep.subr.mxu0 %v363
        %407 = vmatpush1.msra.mxu0 %v362
        %408 = vmatprep.subr.mxu0 %v346
        %409 = vmatpush1.msra.mxu0 %v345
        %410 = vmatprep.subr.mxu0 %v329
        %411 = vmatpush1.msra.mxu0 %v328
        %412 = vmatprep.subr.mxu0 %v242
        %413 = vmatpush1.msra.mxu0 %v241
        %414 = vmatprep.subr.mxu0 %v312
        %415 = vmatpush1.msra.mxu0 %v311
        %416 = vmatprep.subr.mxu0 %v295
        %417 = vmatpush1.msra.mxu0 %v294
        %418 = vmatprep.subr.mxu0 %v278
        %419 = vmatpush1.msra.mxu0 %v277
        %420 = vmatprep.subr.mxu0 %v261
        %421 = vmatpush1.msra.mxu0 %v260
        %422 = vmatprep.subr.mxu0 0.0
        %423 = vmatpush2.msra.mxu0 0.0
        %424 = vmatprep.subr.mxu0 0.0
        %425 = vmatpush2.msra.mxu0 0.0
        %426 = vmatprep.subr.mxu0 0.0
        %427 = vmatpush2.msra.mxu0 0.0
        %428 = vmatprep.subr.mxu0 0.0
        %429 = vmatpush2.msra.mxu0 0.0
        %430 = vmatprep.subr.mxu0 0.0
        %431 = vmatpush2.msra.mxu0 0.0
        %432 = vmatprep.subr.mxu0 0.0
        %433 = vmatpush2.msra.mxu0 0.0
        %434 = vmatprep.subr.mxu0 0.0
        %435 = vmatpush2.msra.mxu0 0.0
        %436 = vmatprep.subr.mxu0 0.0
        %437 = vmatpush2.msra.mxu0 0.0
        %438 = vmatprep.subr.mxu0 0.0
        %439 = vmatpush2.msra.mxu0 0.0
        %440 = vmatprep.subr.mxu0 0.0
        %441 = vmatpush2.msra.mxu0 0.0
        %442 = vmatprep.subr.mxu0 0.0
        %443 = vmatpush2.msra.mxu0 0.0
        %444 = vmatprep.subr.mxu0 0.0
        %445 = vmatpush2.msra.mxu0 0.0
        %446 = vmatprep.subr.mxu0 0.0
        %447 = vmatpush2.msra.mxu0 0.0
        %448 = vmatprep.subr.mxu0 0.0
        %449 = vmatpush2.msra.mxu0 0.0
        %450 = vmatprep.subr.mxu0 0.0
        %451 = vmatpush2.msra.mxu0 0.0
        %452 = vmatprep.subr.mxu0 0.0
        %453 = vmatpush2.msra.mxu0 0.0
        %454 = vmatprep.mubr.f32.mxu0 0.0
        %455 = vmatmul.mubr.f32.gmra.mxu0 %v384
        %v456 = vpop.f32.mrf.mxu0
        %v457 = vadd.f32 0.0, %v456
        %v458 = vpop.f32.mrf.mxu0
        %v459 = vadd.f32 0.0, %v458
        %460 = vdwg.mxu0
        %v461 = vmax.f32 %v457, 0.0
        %v462 = vmax.f32 %v459, 0.0
        %463 = vrot.lane.b32.xlu0 %v461, 17
        %v464 = vpop.permute.xlu0 %463
        %465 = vrot.lane.b32.xlu0 %v462, 17
        %v466 = vpop.permute.xlu0 %465
        %v467 = vsel %vm249, %v464, %v466
        %v468 = vsel %vm249, %v466, %v464
        %v469 = vmul.f32 %v468, %v255
        %v470 = vmul.f32 %v467, %v259
        %471 = vrot.lane.b32.xlu0 %v461, 16
        %v472 = vpop.permute.xlu0 %471
        %473 = vrot.lane.b32.xlu0 %v462, 16
        %v474 = vpop.permute.xlu0 %473
        %v475 = vsel %vm266, %v472, %v474
        %v476 = vsel %vm266, %v474, %v472
        %v477 = vmul.f32 %v476, %v272
        %v478 = vmul.f32 %v475, %v276
        %479 = vrot.lane.b32.xlu0 %v461, 15
        %v480 = vpop.permute.xlu0 %479
        %481 = vrot.lane.b32.xlu0 %v462, 15
        %v482 = vpop.permute.xlu0 %481
        %v483 = vsel %vm283, %v480, %v482
        %v484 = vsel %vm283, %v482, %v480
        %v485 = vmul.f32 %v484, %v289
        %v486 = vmul.f32 %v483, %v293
        %487 = vrot.lane.b32.xlu0 %v461, 1
        %v488 = vpop.permute.xlu0 %487
        %489 = vrot.lane.b32.xlu0 %v462, 1
        %v490 = vpop.permute.xlu0 %489
        %v491 = vsel %vm300, %v488, %v490
        %v492 = vsel %vm300, %v490, %v488
        %v493 = vmul.f32 %v492, %v306
        %v494 = vmul.f32 %v491, %v310
        %495 = vrot.lane.b32.xlu0 %v461, 127
        %v496 = vpop.permute.xlu0 %495
        %497 = vrot.lane.b32.xlu0 %v462, 127
        %v498 = vpop.permute.xlu0 %497
        %v499 = vsel %vm317, %v496, %v498
        %v500 = vsel %vm317, %v498, %v496
        %v501 = vmul.f32 %v499, %v323
        %v502 = vmul.f32 %v500, %v327
        %503 = vrot.lane.b32.xlu0 %v461, 113
        %v504 = vpop.permute.xlu0 %503
        %505 = vrot.lane.b32.xlu0 %v462, 113
        %v506 = vpop.permute.xlu0 %505
        %v507 = vsel %vm334, %v504, %v506
        %v508 = vsel %vm334, %v506, %v504
        %v509 = vmul.f32 %v507, %v340
        %v510 = vmul.f32 %v508, %v344
        %511 = vrot.lane.b32.xlu0 %v461, 112
        %v512 = vpop.permute.xlu0 %511
        %513 = vrot.lane.b32.xlu0 %v462, 112
        %v514 = vpop.permute.xlu0 %513
        %v515 = vsel %vm351, %v512, %v514
        %v516 = vsel %vm351, %v514, %v512
        %v517 = vmul.f32 %v515, %v357
        %v518 = vmul.f32 %v516, %v361
        %519 = vrot.lane.b32.xlu0 %v461, 111
        %v520 = vpop.permute.xlu0 %519
        %521 = vrot.lane.b32.xlu0 %v462, 111
        %v522 = vpop.permute.xlu0 %521
        %v523 = vsel %vm368, %v520, %v522
        %v524 = vsel %vm368, %v522, %v520
        %v525 = vmul.f32 %v523, %v374
        %v526 = vmul.f32 %v524, %v378
        %v527 = vld [vmem:[%s3] sm:$0xf]
        %v529 = vsel %vm382, %v527, 0
        %531 = vmatprep.subr.mxu0 0.0
        %532 = vmatpush1.msra.mxu0 0.0
        %533 = vmatprep.subr.mxu0 0.0
        %534 = vmatpush1.msra.mxu0 0.0
        %535 = vmatprep.subr.mxu0 0.0
        %536 = vmatpush1.msra.mxu0 0.0
        %537 = vmatprep.subr.mxu0 0.0
        %538 = vmatpush1.msra.mxu0 0.0
        %539 = vmatprep.subr.mxu0 0.0
        %540 = vmatpush1.msra.mxu0 0.0
        %541 = vmatprep.subr.mxu0 0.0
        %542 = vmatpush1.msra.mxu0 0.0
        %543 = vmatprep.subr.mxu0 %v388
        %544 = vmatpush1.msra.mxu0 %v388
        %545 = vmatprep.subr.mxu0 %v526
        %546 = vmatpush1.msra.mxu0 %v525
        %547 = vmatprep.subr.mxu0 %v518
        %548 = vmatpush1.msra.mxu0 %v517
        %549 = vmatprep.subr.mxu0 %v510
        %550 = vmatpush1.msra.mxu0 %v509
        %551 = vmatprep.subr.mxu0 %v502
        %552 = vmatpush1.msra.mxu0 %v501
        %553 = vmatprep.subr.mxu0 %v462
        %554 = vmatpush1.msra.mxu0 %v461
        %555 = vmatprep.subr.mxu0 %v494
        %556 = vmatpush1.msra.mxu0 %v493
        %557 = vmatprep.subr.mxu0 %v486
        %558 = vmatpush1.msra.mxu0 %v485
        %559 = vmatprep.subr.mxu0 %v478
        %560 = vmatpush1.msra.mxu0 %v477
        %561 = vmatprep.subr.mxu0 %v470
        %562 = vmatpush1.msra.mxu0 %v469
        %563 = vmatprep.subr.mxu0 0.0
        %564 = vmatpush2.msra.mxu0 0.0
        %565 = vmatprep.subr.mxu0 0.0
        %566 = vmatpush2.msra.mxu0 0.0
        %567 = vmatprep.subr.mxu0 0.0
        %568 = vmatpush2.msra.mxu0 0.0
        %569 = vmatprep.subr.mxu0 0.0
        %570 = vmatpush2.msra.mxu0 0.0
        %571 = vmatprep.subr.mxu0 0.0
        %572 = vmatpush2.msra.mxu0 0.0
        %573 = vmatprep.subr.mxu0 0.0
        %574 = vmatpush2.msra.mxu0 0.0
        %575 = vmatprep.subr.mxu0 0.0
        %576 = vmatpush2.msra.mxu0 0.0
        %577 = vmatprep.subr.mxu0 0.0
        %578 = vmatpush2.msra.mxu0 0.0
        %579 = vmatprep.subr.mxu0 0.0
        %580 = vmatpush2.msra.mxu0 0.0
        %581 = vmatprep.subr.mxu0 0.0
        %582 = vmatpush2.msra.mxu0 0.0
        %583 = vmatprep.subr.mxu0 0.0
        %584 = vmatpush2.msra.mxu0 0.0
        %585 = vmatprep.subr.mxu0 0.0
        %586 = vmatpush2.msra.mxu0 0.0
        %587 = vmatprep.subr.mxu0 0.0
        %588 = vmatpush2.msra.mxu0 0.0
        %589 = vmatprep.subr.mxu0 0.0
        %590 = vmatpush2.msra.mxu0 0.0
        %591 = vmatprep.subr.mxu0 0.0
        %592 = vmatpush2.msra.mxu0 0.0
        %593 = vmatprep.subr.mxu0 0.0
        %594 = vmatpush2.msra.mxu0 0.0
        %595 = vmatprep.mubr.f32.mxu0 0.0
        %596 = vmatmul.mubr.f32.gmra.mxu0 %v529
        %v597 = vpop.f32.mrf.mxu0
        %v598 = vadd.f32 0.0, %v597
        %v599 = vpop.f32.mrf.mxu0
        %v600 = vadd.f32 0.0, %v599
        %601 = vdwg.mxu0
        %v602 = vmax.f32 %v598, 0.0
        %v603 = vmax.f32 %v600, 0.0
        %v606 = vcombine.low %v602, %v603
        %608 = vst [vmem:[%s238] sm:$0xff] %v606
        %s609 = sand.u32 %s119, 1
        %s610 = scalar_lea.sflag [#allocation4], %s609
        %s611 = sand.u32 %s119, 1
        %s612 = smul.addr %s611, 8
        %s613 = scalar_lea.vmem [#allocation8], %s612
        // Predicated region
        $region49: #{tpu_custom_call.1} parent=35 // pred_check
          %p614 = pneg %p129
        $region50: #{tpu_custom_call.1} parent=35 // pred_check_branch
          %616 = sbr.rel (%p614) target = $region52
        $region51: #{tpu_custom_call.1} parent=35 // pred_region
          %s618 = ssub.s32 128, 128
          %619 = vsyncadd %s610, %s618
          %s620 = smul.addr %s22, 2
          %s621 = smul.addr %s620, 64
          %s622 = scalar_lea.hbm %s4, %s621
          %s624 = sshll.u32 %s613, 4
          %s625 = int_to_ptr.vmem [resolvable:$true] %s624
          %627 = dma.vmem_to_hbm [thread:$0]  %s625, 128, %s622, %s610
        $region52: #{tpu_custom_call.1} parent=35 // pred_fallthru
          _
      $region36: #{tpu_custom_call.1} parent=5 // pred_fallthru
        _
      %p628 = scmp.le.s32.totalorder 2, %s17
      // Predicated region
      $region53: #{tpu_custom_call.1} parent=5 // pred_check
        %p629 = pneg %p628
      $region54: #{tpu_custom_call.1} parent=5 // pred_check_branch
        %631 = sbr.rel (%p629) target = $region56
      $region55: #{tpu_custom_call.1} parent=5 // pred_region
        %s632 = ssub.s32 %s17, 2
        // Predicated region
        $region57: #{tpu_custom_call.1} parent=55 // pred_check
          %p633 = pneg %p135
        $region58: #{tpu_custom_call.1} parent=55 // pred_check_branch
          %635 = sbr.rel (%p633) target = $region60
        $region59: #{tpu_custom_call.1} parent=55 // pred_region
          %s636 = sand.u32 %s120, 1
          %s637 = scalar_lea.sflag [#allocation4], %s636
          %s638 = sand.u32 %s120, 1
          %s639 = smul.addr %s638, 8
          %s640 = scalar_lea.vmem [#allocation8], %s639
          %641 = dma.done %s637, 128
        $region60: #{tpu_custom_call.1} parent=55 // pred_fallthru
          _
      $region56: #{tpu_custom_call.1} parent=5 // pred_fallthru
        _
    $region6: #{tpu_custom_call.1} parent=1 // loop_footer
      %s21 = sadd.s32 1, %s17
    $region7: #{tpu_custom_call.1} parent=1 // loop_footer_branch
      %16 = sbr.rel target = $region3
    $region8: #{tpu_custom_call.1} parent=1 // loop_exit
      _
    %642 = vsyncpa [#allocation3], 1
    %s643 = scalar_lea.sflag [#allocation3], 1
    %644 = vsyncpa %s643, 1
    %645 = vsyncpa [#allocation6], 1
    %s646 = scalar_lea.sflag [#allocation6], 1
    %647 = vsyncpa %s646, 1
    %648 = vsyncpa [#allocation4], 1
    %s649 = scalar_lea.sflag [#allocation4], 1
    %650 = vsyncpa %s649, 1

</llo_original>
